<compile_context>
chip_gen: v6e
topology: v6e:2x2x1
jax: 0.10.0
libtpu: 0.0.40
codegen_flags: <defaults>
</compile_context>

<pallas_src>
import jax
import jax.numpy as jnp
from jax.experimental import pallas as pl
from jax.experimental.pallas import tpu as pltpu


def gate_kernel(x_ref,              # (C, B*HW)  f32, spatial on lanes
                w1f_ref, b1f_ref,   # (C4, C), (C4, 1)   conv1 with BN folded in
                w2_ref, b2_ref,     # (C4, 1), (1, 1)
                we1t_ref, be1_ref,  # (C2, 2C), (C2, 1)  1/HW folded into avg half
                we2t_ref, be2_ref,  # (E, C2), (E, 1)    1/temperature folded in
                o_ref):             # (E, B)
    C, BHW = x_ref.shape
    E, B = o_ref.shape
    HW = BHW // B

    x = x_ref[...]

    # ---- spatial gate: 1x1 conv (+ folded BN) -> SiLU -> 1x1 conv -> sigmoid ----
    h = jnp.dot(w1f_ref[...], x, preferred_element_type=jnp.float32) + b1f_ref[...]  # (C4, BHW)
    h = h * jax.nn.sigmoid(h)                                     # SiLU
    # C4 -> 1 conv as VPU multiply + sublane reduce (no 1-wide MXU matmul).
    s = jnp.sum(h * w2_ref[...], axis=0, keepdims=True) + b2_ref[...]   # (1, BHW)
    s = jax.nn.sigmoid(s)
    xg = x * s                                                    # (C, BHW)

    # ---- per-batch global sum / max pooling on lane-aligned HW slices ----
    # (HW is a multiple of 128, so each slice is vreg-aligned; 1/HW is folded
    #  into the expert weight so a plain sum replaces the mean.)
    sum_cols = []
    max_cols = []
    for b in range(B):                              # tiny static unroll
        xb = xg[:, b * HW:(b + 1) * HW]             # (C, HW)
        sum_cols.append(jnp.sum(xb, axis=1, keepdims=True))      # (C, 1)
        max_cols.append(jnp.max(xb, axis=1, keepdims=True))      # (C, 1)
    comb = jnp.concatenate(
        [jnp.concatenate(sum_cols, axis=1),
         jnp.concatenate(max_cols, axis=1)], axis=0)             # (2C, B)

    # ---- expert gate MLP: one merged K=2C matmul -> SiLU -> E projection ----
    g = jnp.dot(we1t_ref[...], comb, preferred_element_type=jnp.float32) + be1_ref[...]  # (C2, B)
    g = g * jax.nn.sigmoid(g)                                    # SiLU
    # Dropout(0.2): identity (eval).
    g = jnp.dot(we2t_ref[...], g, preferred_element_type=jnp.float32) + be2_ref[...]     # (E, B)
    # 1/temperature already folded into we2t / be2.

    # softmax over experts (sublane axis)
    g = g - jnp.max(g, axis=0, keepdims=True)
    e = jnp.exp(g)
    o_ref[...] = e / jnp.sum(e, axis=0, keepdims=True)


def _gate_forward_impl(x_nchw, params):
    """x_nchw: (B, C, H, W) float32. Returns softmax gates (B, num_experts)."""
    B, C, H, W = x_nchw.shape
    HW = H * W
    E = params["we2"].shape[1]

    # Channel-major / spatial-on-lanes layout: (C, B*HW). One small transpose
    # inside the jitted program.
    x = jnp.transpose(x_nchw.reshape(B, C, HW), (1, 0, 2)).reshape(C, B * HW)

    # ---- wrapper-time algebraic folds (all exact) ----
    w1f = params["w1"].T * params["bns"][:, None]                    # (C4, C)  BN scale folded
    b1f = (params["b1"] * params["bns"] + params["bnb"])[:, None]    # (C4, 1)  BN shift folded
    w2c = params["w2"][:, None]                                      # (C4, 1)
    b2c = params["b2"].reshape(1, 1)                                 # (1, 1)
    we1t = params["we1"].T                                           # (C2, 2C)
    we1tf = jnp.concatenate([we1t[:, :C] / HW, we1t[:, C:]], axis=1) # avg -> sum fold
    be1c = params["be1"][:, None]                                    # (C2, 1)
    inv_t = 1.0 / params["temp"]
    we2ts = params["we2"].T * inv_t                                  # (E, C2)  temperature folded
    be2cs = (params["be2"] * inv_t)[:, None]                         # (E, 1)

    weights = [w1f, b1f, w2c, b2c, we1tf, be1c, we2ts, be2cs]

    def spec(a):  # every operand is 2-D and consumed whole
        return pl.BlockSpec(a.shape, lambda i: (0, 0))

    out = pl.pallas_call(
        gate_kernel,
        out_shape=jax.ShapeDtypeStruct((E, B), jnp.float32),
        grid_spec=pltpu.PrefetchScalarGridSpec(
            num_scalar_prefetch=0,
            grid=(1,),                       # whole problem in a single grid step
            in_specs=[spec(x)] + [spec(w) for w in weights],
            out_specs=pl.BlockSpec((E, B), lambda i: (0, 0)),
        ),
        compiler_params=pltpu.CompilerParams(
            dimension_semantics=("arbitrary",)),
    )(x, *weights)

    # Tiny (E,B)->(B,E) transpose; fuses into the same jitted XLA program, so
    # there is no extra host-side dispatch.
    return out.T


gate_forward = jax.jit(_gate_forward_impl)


def make_params(key, in_dim, num_experts, temperature=0.1):
    """Deterministic synthetic parameters in natural (in, out) matmul layout
    (equivalent to the transposed PyTorch (out, in) conv/linear weights)."""
    c4, c2 = in_dim // 4, in_dim // 2
    ks = jax.random.split(key, 8)
    init = lambda k, shape, fan_in: jax.random.normal(k, shape, jnp.float32) / jnp.sqrt(fan_in)
    eps = 1e-5
    gamma = jnp.ones((c4,), jnp.float32)
    beta = jnp.zeros((c4,), jnp.float32)
    run_mean = jnp.zeros((c4,), jnp.float32)
    run_var = jnp.ones((c4,), jnp.float32)
    bns = gamma / jnp.sqrt(run_var + eps)
    bnb = beta - run_mean * bns
    return {
        "w1": init(ks[0], (in_dim, c4), in_dim),
        "b1": init(ks[1], (c4,), in_dim),
        "bns": bns,
        "bnb": bnb,
        "w2": init(ks[2], (c4,), c4),
        "b2": init(ks[3], (), c4),
        "we1": init(ks[4], (2 * in_dim, c2), 2 * in_dim),
        "be1": init(ks[5], (c2,), 2 * in_dim),
        "we2": init(ks[6], (c2, num_experts), c2),
        "be2": init(ks[7], (num_experts,), c2),
        "temp": jnp.asarray(temperature, jnp.float32),
    }


def gate_reference(x_nchw, p):
    """Plain-JAX reference (pixel-major layout, no folds) for verification."""
    B, C, H, W = x_nchw.shape
    x = jnp.transpose(x_nchw.reshape(B, C, H * W), (0, 2, 1))   # (B, HW, C)
    h = x @ p["w1"] + p["b1"]
    h = h * p["bns"] + p["bnb"]
    h = h * jax.nn.sigmoid(h)
    s = jax.nn.sigmoid(h @ p["w2"][:, None] + p["b2"])          # (B, HW, 1)
    xg = x * s
    comb = jnp.concatenate([xg.mean(axis=1), xg.max(axis=1)], axis=1)   # (B, 2C)
    g = comb @ p["we1"] + p["be1"]
    g = g * jax.nn.sigmoid(g)
    g = g @ p["we2"] + p["be2"]
    g = g / p["temp"]
    return jax.nn.softmax(g, axis=1)


if __name__ == "__main__":
    B, C, H, W = 2, 32, 16, 16
    NUM_EXPERTS = 4

    key = jax.random.PRNGKey(0)
    kx, kp = jax.random.split(key)
    x = jax.random.normal(kx, (B, C, H, W), jnp.float32)
    params = make_params(kp, C, NUM_EXPERTS, temperature=0.1)

    out = gate_forward(x, params)
    out = jax.block_until_ready(out)

    ref = gate_reference(x, params)
    assert out.shape == (B, NUM_EXPERTS)
    assert jnp.allclose(out, ref, atol=1e-4, rtol=1e-4), "mismatch vs reference"
    assert jnp.allclose(out.sum(axis=1), 1.0, atol=1e-5), "softmax rows must sum to 1"

    print("KERNEL_OK")
</pallas_src>

<mosaic_0001>
module attributes {stable_mosaic.version = 11 : i64} {
  func.func @gate_kernel(%arg0: i32, %arg1: memref<32x512xf32, #tpu.memory_space<vmem>>, %arg2: memref<8x32xf32, #tpu.memory_space<vmem>>, %arg3: memref<8x1xf32, #tpu.memory_space<vmem>>, %arg4: memref<8x1xf32, #tpu.memory_space<vmem>>, %arg5: memref<1x1xf32, #tpu.memory_space<vmem>>, %arg6: memref<16x64xf32, #tpu.memory_space<vmem>>, %arg7: memref<16x1xf32, #tpu.memory_space<vmem>>, %arg8: memref<4x16xf32, #tpu.memory_space<vmem>>, %arg9: memref<4x1xf32, #tpu.memory_space<vmem>>, %arg10: memref<4x2xf32, #tpu.memory_space<vmem>>) attributes {dimension_semantics = [#tpu.dimension_semantics<arbitrary>], iteration_bounds = array<i64: 1>, scalar_prefetch = 0 : i64, scratch_operands = 0 : i64, tpu.core_type = #tpu.core_type<tc>, window_params = [{pipeline_mode = #tpu.pipeline_mode<synchronous>, transform_indices = @transform_0, window_bounds = array<i64: 32, 512>}, {pipeline_mode = #tpu.pipeline_mode<synchronous>, transform_indices = @transform_1, window_bounds = array<i64: 8, 32>}, {pipeline_mode = #tpu.pipeline_mode<synchronous>, transform_indices = @transform_2, window_bounds = array<i64: 8, 1>}, {pipeline_mode = #tpu.pipeline_mode<synchronous>, transform_indices = @transform_3, window_bounds = array<i64: 8, 1>}, {pipeline_mode = #tpu.pipeline_mode<synchronous>, transform_indices = @transform_4, window_bounds = array<i64: 1, 1>}, {pipeline_mode = #tpu.pipeline_mode<synchronous>, transform_indices = @transform_5, window_bounds = array<i64: 16, 64>}, {pipeline_mode = #tpu.pipeline_mode<synchronous>, transform_indices = @transform_6, window_bounds = array<i64: 16, 1>}, {pipeline_mode = #tpu.pipeline_mode<synchronous>, transform_indices = @transform_7, window_bounds = array<i64: 4, 16>}, {pipeline_mode = #tpu.pipeline_mode<synchronous>, transform_indices = @transform_8, window_bounds = array<i64: 4, 1>}, {pipeline_mode = #tpu.pipeline_mode<synchronous>, transform_indices = @transform_9, window_bounds = array<i64: 4, 2>}]} {
    %c0 = arith.constant 0 : index
    %c0_0 = arith.constant 0 : index
    %0 = vector.load %arg1[%c0, %c0_0] : memref<32x512xf32, #tpu.memory_space<vmem>>, vector<32x512xf32>
    %c0_1 = arith.constant 0 : index
    %c0_2 = arith.constant 0 : index
    %1 = vector.load %arg2[%c0_1, %c0_2] : memref<8x32xf32, #tpu.memory_space<vmem>>, vector<8x32xf32>
    %cst = arith.constant dense<0.000000e+00> : vector<8x512xf32>
    %2 = tpu.matmul %1, %0, %cst {dimension_numbers = #tpu.dot_dimension_numbers<[1], [0], [0], [1], [0, 0, 1, 1], [], []>} : vector<8x32xf32>, vector<32x512xf32>, vector<8x512xf32> -> vector<8x512xf32>
    %c0_3 = arith.constant 0 : index
    %c0_4 = arith.constant 0 : index
    %3 = vector.load %arg3[%c0_3, %c0_4] : memref<8x1xf32, #tpu.memory_space<vmem>>, vector<8x1xf32>
    %4 = vector.broadcast %3 : vector<8x1xf32> to vector<8x512xf32>
    %5 = arith.addf %2, %4 : vector<8x512xf32>
    %6 = arith.negf %5 : vector<8x512xf32>
    %7 = math.exp %6 : vector<8x512xf32>
    %cst_5 = arith.constant 1.000000e+00 : f32
    %8 = vector.broadcast %cst_5 : f32 to vector<8x512xf32>
    %9 = arith.addf %8, %7 : vector<8x512xf32>
    %10 = arith.divf %8, %9 : vector<8x512xf32>
    %11 = arith.mulf %5, %10 : vector<8x512xf32>
    %c0_6 = arith.constant 0 : index
    %c0_7 = arith.constant 0 : index
    %12 = vector.load %arg4[%c0_6, %c0_7] : memref<8x1xf32, #tpu.memory_space<vmem>>, vector<8x1xf32>
    %13 = vector.broadcast %12 : vector<8x1xf32> to vector<8x512xf32>
    %14 = arith.mulf %11, %13 : vector<8x512xf32>
    %cst_8 = arith.constant dense<0.000000e+00> : vector<512xf32>
    %15 = vector.multi_reduction <add>, %14, %cst_8 [0] : vector<8x512xf32> to vector<512xf32>
    %16 = vector.shape_cast %15 : vector<512xf32> to vector<1x512xf32>
    %c0_9 = arith.constant 0 : index
    %c0_10 = arith.constant 0 : index
    %17 = vector.load %arg5[%c0_9, %c0_10] : memref<1x1xf32, #tpu.memory_space<vmem>>, vector<1x1xf32>
    %18 = vector.broadcast %17 : vector<1x1xf32> to vector<1x512xf32>
    %19 = arith.addf %16, %18 : vector<1x512xf32>
    %20 = arith.negf %19 : vector<1x512xf32>
    %21 = math.exp %20 : vector<1x512xf32>
    %cst_11 = arith.constant 1.000000e+00 : f32
    %22 = vector.broadcast %cst_11 : f32 to vector<1x512xf32>
    %23 = arith.addf %22, %21 : vector<1x512xf32>
    %24 = arith.divf %22, %23 : vector<1x512xf32>
    %25 = vector.broadcast %24 : vector<1x512xf32> to vector<32x512xf32>
    %26 = arith.mulf %0, %25 : vector<32x512xf32>
    %27 = vector.extract_strided_slice %26 {offsets = [0, 0], sizes = [32, 256], strides = [1, 1]} : vector<32x512xf32> to vector<32x256xf32>
    %cst_12 = arith.constant dense<0.000000e+00> : vector<32xf32>
    %28 = vector.multi_reduction <add>, %27, %cst_12 [1] : vector<32x256xf32> to vector<32xf32>
    %29 = vector.shape_cast %28 : vector<32xf32> to vector<32x1xf32>
    %cst_13 = arith.constant dense<0xFF800000> : vector<32xf32>
    %30 = vector.multi_reduction <maximumf>, %27, %cst_13 [1] : vector<32x256xf32> to vector<32xf32>
    %31 = vector.shape_cast %30 : vector<32xf32> to vector<32x1xf32>
    %32 = vector.extract_strided_slice %26 {offsets = [0, 256], sizes = [32, 256], strides = [1, 1]} : vector<32x512xf32> to vector<32x256xf32>
    %cst_14 = arith.constant dense<0.000000e+00> : vector<32xf32>
    %33 = vector.multi_reduction <add>, %32, %cst_14 [1] : vector<32x256xf32> to vector<32xf32>
    %34 = vector.shape_cast %33 : vector<32xf32> to vector<32x1xf32>
    %cst_15 = arith.constant dense<0xFF800000> : vector<32xf32>
    %35 = vector.multi_reduction <maximumf>, %32, %cst_15 [1] : vector<32x256xf32> to vector<32xf32>
    %36 = vector.shape_cast %35 : vector<32xf32> to vector<32x1xf32>
    %37 = tpu.concatenate %29, %34 in 1 : vector<32x1xf32>, vector<32x1xf32> -> vector<32x2xf32>
    %38 = tpu.concatenate %31, %36 in 1 : vector<32x1xf32>, vector<32x1xf32> -> vector<32x2xf32>
    %39 = tpu.concatenate %37, %38 in 0 : vector<32x2xf32>, vector<32x2xf32> -> vector<64x2xf32>
    %c0_16 = arith.constant 0 : index
    %c0_17 = arith.constant 0 : index
    %40 = vector.load %arg6[%c0_16, %c0_17] : memref<16x64xf32, #tpu.memory_space<vmem>>, vector<16x64xf32>
    %cst_18 = arith.constant dense<0.000000e+00> : vector<16x2xf32>
    %41 = tpu.matmul %40, %39, %cst_18 {dimension_numbers = #tpu.dot_dimension_numbers<[1], [0], [0], [1], [0, 0, 1, 1], [], []>} : vector<16x64xf32>, vector<64x2xf32>, vector<16x2xf32> -> vector<16x2xf32>
    %c0_19 = arith.constant 0 : index
    %c0_20 = arith.constant 0 : index
    %42 = vector.load %arg7[%c0_19, %c0_20] : memref<16x1xf32, #tpu.memory_space<vmem>>, vector<16x1xf32>
    %43 = vector.broadcast %42 : vector<16x1xf32> to vector<16x2xf32>
    %44 = arith.addf %41, %43 : vector<16x2xf32>
    %45 = arith.negf %44 : vector<16x2xf32>
    %46 = math.exp %45 : vector<16x2xf32>
    %cst_21 = arith.constant 1.000000e+00 : f32
    %47 = vector.broadcast %cst_21 : f32 to vector<16x2xf32>
    %48 = arith.addf %47, %46 : vector<16x2xf32>
    %49 = arith.divf %47, %48 : vector<16x2xf32>
    %50 = arith.mulf %44, %49 : vector<16x2xf32>
    %c0_22 = arith.constant 0 : index
    %c0_23 = arith.constant 0 : index
    %51 = vector.load %arg8[%c0_22, %c0_23] : memref<4x16xf32, #tpu.memory_space<vmem>>, vector<4x16xf32>
    %cst_24 = arith.constant dense<0.000000e+00> : vector<4x2xf32>
    %52 = tpu.matmul %51, %50, %cst_24 {dimension_numbers = #tpu.dot_dimension_numbers<[1], [0], [0], [1], [0, 0, 1, 1], [], []>} : vector<4x16xf32>, vector<16x2xf32>, vector<4x2xf32> -> vector<4x2xf32>
    %c0_25 = arith.constant 0 : index
    %c0_26 = arith.constant 0 : index
    %53 = vector.load %arg9[%c0_25, %c0_26] : memref<4x1xf32, #tpu.memory_space<vmem>>, vector<4x1xf32>
    %54 = vector.broadcast %53 : vector<4x1xf32> to vector<4x2xf32>
    %55 = arith.addf %52, %54 : vector<4x2xf32>
    %cst_27 = arith.constant dense<0xFF800000> : vector<2xf32>
    %56 = vector.multi_reduction <maximumf>, %55, %cst_27 [0] : vector<4x2xf32> to vector<2xf32>
    %57 = vector.shape_cast %56 : vector<2xf32> to vector<1x2xf32>
    %58 = vector.broadcast %57 : vector<1x2xf32> to vector<4x2xf32>
    %59 = arith.subf %55, %58 : vector<4x2xf32>
    %60 = math.exp %59 : vector<4x2xf32>
    %cst_28 = arith.constant dense<0.000000e+00> : vector<2xf32>
    %61 = vector.multi_reduction <add>, %60, %cst_28 [0] : vector<4x2xf32> to vector<2xf32>
    %62 = vector.shape_cast %61 : vector<2xf32> to vector<1x2xf32>
    %63 = vector.broadcast %62 : vector<1x2xf32> to vector<4x2xf32>
    %64 = arith.divf %60, %63 : vector<4x2xf32>
    %c0_29 = arith.constant 0 : index
    %c0_30 = arith.constant 0 : index
    %65 = vector.load %arg10[%c0_29, %c0_30] : memref<4x2xf32, #tpu.memory_space<vmem>>, vector<4x2xf32>
    tpu.vector_store %arg10[%c0_29, %c0_30], %64 {strides = array<i32>} : memref<4x2xf32, #tpu.memory_space<vmem>>, vector<4x2xf32>,
    return
  }
  func.func @transform_0(%arg0: i32) -> (i32, i32) {
    %c0_i32 = arith.constant 0 : i32
    %c0_i32_0 = arith.constant 0 : i32
    %c0_i32_1 = arith.constant 0 : i32
    return %c0_i32, %c0_i32_0 : i32, i32
  }
  func.func @transform_1(%arg0: i32) -> (i32, i32) {
    %c0_i32 = arith.constant 0 : i32
    %c0_i32_0 = arith.constant 0 : i32
    %c0_i32_1 = arith.constant 0 : i32
    return %c0_i32, %c0_i32_0 : i32, i32
  }
  func.func @transform_2(%arg0: i32) -> (i32, i32) {
    %c0_i32 = arith.constant 0 : i32
    %c0_i32_0 = arith.constant 0 : i32
    %c0_i32_1 = arith.constant 0 : i32
    return %c0_i32, %c0_i32_0 : i32, i32
  }
  func.func @transform_3(%arg0: i32) -> (i32, i32) {
    %c0_i32 = arith.constant 0 : i32
    %c0_i32_0 = arith.constant 0 : i32
    %c0_i32_1 = arith.constant 0 : i32
    return %c0_i32, %c0_i32_0 : i32, i32
  }
  func.func @transform_4(%arg0: i32) -> (i32, i32) {
    %c0_i32 = arith.constant 0 : i32
    %c0_i32_0 = arith.constant 0 : i32
    %c0_i32_1 = arith.constant 0 : i32
    return %c0_i32, %c0_i32_0 : i32, i32
  }
  func.func @transform_5(%arg0: i32) -> (i32, i32) {
    %c0_i32 = arith.constant 0 : i32
    %c0_i32_0 = arith.constant 0 : i32
    %c0_i32_1 = arith.constant 0 : i32
    return %c0_i32, %c0_i32_0 : i32, i32
  }
  func.func @transform_6(%arg0: i32) -> (i32, i32) {
    %c0_i32 = arith.constant 0 : i32
    %c0_i32_0 = arith.constant 0 : i32
    %c0_i32_1 = arith.constant 0 : i32
    return %c0_i32, %c0_i32_0 : i32, i32
  }
  func.func @transform_7(%arg0: i32) -> (i32, i32) {
    %c0_i32 = arith.constant 0 : i32
    %c0_i32_0 = arith.constant 0 : i32
    %c0_i32_1 = arith.constant 0 : i32
    return %c0_i32, %c0_i32_0 : i32, i32
  }
  func.func @transform_8(%arg0: i32) -> (i32, i32) {
    %c0_i32 = arith.constant 0 : i32
    %c0_i32_0 = arith.constant 0 : i32
    %c0_i32_1 = arith.constant 0 : i32
    return %c0_i32, %c0_i32_0 : i32, i32
  }
  func.func @transform_9(%arg0: i32) -> (i32, i32) {
    %c0_i32 = arith.constant 0 : i32
    %c0_i32_0 = arith.constant 0 : i32
    %c0_i32_1 = arith.constant 0 : i32
    return %c0_i32, %c0_i32_0 : i32, i32
  }
}

</mosaic_0001>

<llo_original>
// kernel: _gate_forward_impl.1
$region0: #{_gate_forward_impl.1}
  #allocation0 [shape = 'u32[]', space=smem, size = 0x4, offset = 0x4, fixed_abs, tag = 'smem constant byte address 0x4 - core index']
  #allocation1 [shape = 'u32[144,128]{1,0:T(1,128)}', space=vmem, size = 0x12000, scoped, tag = 'internal scratch']
  #allocation2 [shape = 'f32[1,1]{1,0:T(1,128)S(1)}', space=vmem, size = 0x200, scoped, tag = 'scoped memory for _gate_forward_impl.1']
  %s0 = inlined_call_operand.vmem [shape: f32[32,512], index: 0, kind: input, shape index: {}]
  %s1 = inlined_call_operand.vmem [shape: f32[8,32], index: 1, kind: input, shape index: {}]
  %s2 = inlined_call_operand.vmem [shape: f32[8,1], index: 2, kind: input, shape index: {}]
  %s3 = inlined_call_operand.vmem [shape: f32[8,1], index: 3, kind: input, shape index: {}]
  %s4 = inlined_call_operand.<no memory space> [shape: f32[1,1], index: 4, kind: input, shape index: {}]
  %s5 = inlined_call_operand.vmem [shape: f32[16,64], index: 5, kind: input, shape index: {}]
  %s6 = inlined_call_operand.vmem [shape: f32[16,1], index: 6, kind: input, shape index: {}]
  %s7 = inlined_call_operand.vmem [shape: f32[4,16], index: 7, kind: input, shape index: {}]
  %s8 = inlined_call_operand.vmem [shape: f32[4,1], index: 8, kind: input, shape index: {}]
  %s9 = inlined_call_operand.vmem [shape: f32[4,2], index: 9, kind: output, shape index: {}]
  %s10 = sld [smem:[#allocation0]]
  $region46: #{_gate_forward_impl.1} parent=0
    _
  %s12 = ssub.s32 1, %s10
  %s13 = scalar_select 0, %s12, %s10
  %v14 = vstv %s4
  %15 = vst [vmem:[#allocation2] sm:$0x1] %v14
  // Predicated region
  $region2: #{_gate_forward_impl.1} parent=0 // pred_check
    _
  $region3: #{_gate_forward_impl.1} parent=0 // pred_check_branch
    %17 = sbr.rel (0) target = $region5
  $region4: #{_gate_forward_impl.1} parent=0 // pred_region
    _
  $region5: #{_gate_forward_impl.1} parent=0 // pred_fallthru
    _
  // Predicated region
  $region6: #{_gate_forward_impl.1} parent=0 // pred_check
    _
  $region7: #{_gate_forward_impl.1} parent=0 // pred_check_branch
    %19 = sbr.rel (0) target = $region9
  $region8: #{_gate_forward_impl.1} parent=0 // pred_region
    _
  $region9: #{_gate_forward_impl.1} parent=0 // pred_fallthru
    _
  // Predicated region
  $region10: #{_gate_forward_impl.1} parent=0 // pred_check
    _
  $region11: #{_gate_forward_impl.1} parent=0 // pred_check_branch
    %21 = sbr.rel (0) target = $region13
  $region12: #{_gate_forward_impl.1} parent=0 // pred_region
    _
  $region13: #{_gate_forward_impl.1} parent=0 // pred_fallthru
    _
  // Predicated region
  $region14: #{_gate_forward_impl.1} parent=0 // pred_check
    _
  $region15: #{_gate_forward_impl.1} parent=0 // pred_check_branch
    %23 = sbr.rel (0) target = $region17
  $region16: #{_gate_forward_impl.1} parent=0 // pred_region
    _
  $region17: #{_gate_forward_impl.1} parent=0 // pred_fallthru
    _
  // Predicated region
  $region18: #{_gate_forward_impl.1} parent=0 // pred_check
    _
  $region19: #{_gate_forward_impl.1} parent=0 // pred_check_branch
    %25 = sbr.rel (0) target = $region21
  $region20: #{_gate_forward_impl.1} parent=0 // pred_region
    _
  $region21: #{_gate_forward_impl.1} parent=0 // pred_fallthru
    _
  // Predicated region
  $region22: #{_gate_forward_impl.1} parent=0 // pred_check
    _
  $region23: #{_gate_forward_impl.1} parent=0 // pred_check_branch
    %27 = sbr.rel (0) target = $region25
  $region24: #{_gate_forward_impl.1} parent=0 // pred_region
    _
  $region25: #{_gate_forward_impl.1} parent=0 // pred_fallthru
    _
  // Predicated region
  $region26: #{_gate_forward_impl.1} parent=0 // pred_check
    _
  $region27: #{_gate_forward_impl.1} parent=0 // pred_check_branch
    %29 = sbr.rel (0) target = $region29
  $region28: #{_gate_forward_impl.1} parent=0 // pred_region
    _
  $region29: #{_gate_forward_impl.1} parent=0 // pred_fallthru
    _
  // Predicated region
  $region30: #{_gate_forward_impl.1} parent=0 // pred_check
    _
  $region31: #{_gate_forward_impl.1} parent=0 // pred_check_branch
    %31 = sbr.rel (0) target = $region33
  $region32: #{_gate_forward_impl.1} parent=0 // pred_region
    _
  $region33: #{_gate_forward_impl.1} parent=0 // pred_fallthru
    _
  // Predicated region
  $region34: #{_gate_forward_impl.1} parent=0 // pred_check
    _
  $region35: #{_gate_forward_impl.1} parent=0 // pred_check_branch
    %33 = sbr.rel (0) target = $region37
  $region36: #{_gate_forward_impl.1} parent=0 // pred_region
    _
  $region37: #{_gate_forward_impl.1} parent=0 // pred_fallthru
    _
  %v34 = vld [vmem:[%s0] sm:$0xff]
  %v35 = vld [vmem:[%s0 + $0x8] sm:$0xff]
  %v36 = vld [vmem:[%s0 + $0x10] sm:$0xff]
  %v37 = vld [vmem:[%s0 + $0x18] sm:$0xff]
  %v38 = vld [vmem:[%s0 + $0x20] sm:$0xff]
  %v39 = vld [vmem:[%s0 + $0x28] sm:$0xff]
  %v40 = vld [vmem:[%s0 + $0x30] sm:$0xff]
  %v41 = vld [vmem:[%s0 + $0x38] sm:$0xff]
  %v42 = vld [vmem:[%s0 + $0x40] sm:$0xff]
  %v43 = vld [vmem:[%s0 + $0x48] sm:$0xff]
  %v44 = vld [vmem:[%s0 + $0x50] sm:$0xff]
  %v45 = vld [vmem:[%s0 + $0x58] sm:$0xff]
  %v46 = vld [vmem:[%s0 + $0x60] sm:$0xff]
  %v47 = vld [vmem:[%s0 + $0x68] sm:$0xff]
  %v48 = vld [vmem:[%s0 + $0x70] sm:$0xff]
  %v49 = vld [vmem:[%s0 + $0x78] sm:$0xff]
  %v50 = vld [vmem:[%s1] sm:$0xff]
  %v51 = vld [vmem:[%s2] sm:$0xff]
  %53 = vset.pattern.permute.xlu0 0
  %54 = vperm.xlu0 %53, %v51
  %v55 = vpop.permute.xlu0 %54
  %vm57 = vcmask 261120
  %v59 = vsel %vm57, %v50, 0
  %61 = vmatprep.subr.mxu0 0.0
  %62 = vmatpush1.msra.mxu0 0.0
  %63 = vmatprep.subr.mxu0 0.0
  %64 = vmatpush1.msra.mxu0 0.0
  %65 = vmatprep.subr.mxu0 0.0
  %66 = vmatpush1.msra.mxu0 0.0
  %67 = vmatprep.subr.mxu0 0.0
  %68 = vmatpush1.msra.mxu0 0.0
  %69 = vmatprep.subr.mxu0 0.0
  %70 = vmatpush1.msra.mxu0 0.0
  %71 = vmatprep.subr.mxu0 0.0
  %72 = vmatpush1.msra.mxu0 0.0
  %73 = vmatprep.subr.mxu0 0.0
  %74 = vmatpush1.msra.mxu0 0.0
  %75 = vmatprep.subr.mxu0 0.0
  %76 = vmatpush1.msra.mxu0 0.0
  %77 = vmatprep.subr.mxu0 0.0
  %78 = vmatpush1.msra.mxu0 0.0
  %79 = vmatprep.subr.mxu0 0.0
  %80 = vmatpush1.msra.mxu0 0.0
  %81 = vmatprep.subr.mxu0 0.0
  %82 = vmatpush1.msra.mxu0 0.0
  %83 = vmatprep.subr.mxu0 0.0
  %84 = vmatpush1.msra.mxu0 0.0
  %85 = vmatprep.subr.mxu0 %v47
  %86 = vmatpush1.msra.mxu0 %v46
  %87 = vmatprep.subr.mxu0 %v43
  %88 = vmatpush1.msra.mxu0 %v42
  %89 = vmatprep.subr.mxu0 %v39
  %90 = vmatpush1.msra.mxu0 %v38
  %91 = vmatprep.subr.mxu0 %v35
  %92 = vmatpush1.msra.mxu0 %v34
  %93 = vmatprep.subr.mxu0 0.0
  %94 = vmatpush2.msra.mxu0 0.0
  %95 = vmatprep.subr.mxu0 0.0
  %96 = vmatpush2.msra.mxu0 0.0
  %97 = vmatprep.subr.mxu0 0.0
  %98 = vmatpush2.msra.mxu0 0.0
  %99 = vmatprep.subr.mxu0 0.0
  %100 = vmatpush2.msra.mxu0 0.0
  %101 = vmatprep.subr.mxu0 0.0
  %102 = vmatpush2.msra.mxu0 0.0
  %103 = vmatprep.subr.mxu0 0.0
  %104 = vmatpush2.msra.mxu0 0.0
  %105 = vmatprep.subr.mxu0 0.0
  %106 = vmatpush2.msra.mxu0 0.0
  %107 = vmatprep.subr.mxu0 0.0
  %108 = vmatpush2.msra.mxu0 0.0
  %109 = vmatprep.subr.mxu0 0.0
  %110 = vmatpush2.msra.mxu0 0.0
  %111 = vmatprep.subr.mxu0 0.0
  %112 = vmatpush2.msra.mxu0 0.0
  %113 = vmatprep.subr.mxu0 0.0
  %114 = vmatpush2.msra.mxu0 0.0
  %115 = vmatprep.subr.mxu0 0.0
  %116 = vmatpush2.msra.mxu0 0.0
  %117 = vmatprep.subr.mxu0 0.0
  %118 = vmatpush2.msra.mxu0 0.0
  %119 = vmatprep.subr.mxu0 0.0
  %120 = vmatpush2.msra.mxu0 0.0
  %121 = vmatprep.subr.mxu0 0.0
  %122 = vmatpush2.msra.mxu0 0.0
  %123 = vmatprep.subr.mxu0 0.0
  %124 = vmatpush2.msra.mxu0 0.0
  %125 = vmatprep.mubr.f32.mxu0 0.0
  %126 = vmatmul.mubr.f32.gmra.mxu0 %v59
  %v127 = vpop.f32.mrf.mxu0
  %v128 = vadd.f32 %v55, %v127
  %v129 = vpop.f32.mrf.mxu0
  %v130 = vadd.f32 %v55, %v129
  %131 = vdwg.mxu0
  %132 = vmatprep.subr.mxu0 0.0
  %133 = vmatpush1.msra.mxu0 0.0
  %134 = vmatprep.subr.mxu0 0.0
  %135 = vmatpush1.msra.mxu0 0.0
  %136 = vmatprep.subr.mxu0 0.0
  %137 = vmatpush1.msra.mxu0 0.0
  %138 = vmatprep.subr.mxu0 0.0
  %139 = vmatpush1.msra.mxu0 0.0
  %140 = vmatprep.subr.mxu0 0.0
  %141 = vmatpush1.msra.mxu0 0.0
  %142 = vmatprep.subr.mxu0 0.0
  %143 = vmatpush1.msra.mxu0 0.0
  %144 = vmatprep.subr.mxu0 0.0
  %145 = vmatpush1.msra.mxu0 0.0
  %146 = vmatprep.subr.mxu0 0.0
  %147 = vmatpush1.msra.mxu0 0.0
  %148 = vmatprep.subr.mxu0 0.0
  %149 = vmatpush1.msra.mxu0 0.0
  %150 = vmatprep.subr.mxu0 0.0
  %151 = vmatpush1.msra.mxu0 0.0
  %152 = vmatprep.subr.mxu0 0.0
  %153 = vmatpush1.msra.mxu0 0.0
  %154 = vmatprep.subr.mxu0 0.0
  %155 = vmatpush1.msra.mxu0 0.0
  %156 = vmatprep.subr.mxu0 %v49
  %157 = vmatpush1.msra.mxu0 %v48
  %158 = vmatprep.subr.mxu0 %v45
  %159 = vmatpush1.msra.mxu0 %v44
  %160 = vmatprep.subr.mxu0 %v41
  %161 = vmatpush1.msra.mxu0 %v40
  %162 = vmatprep.subr.mxu0 %v37
  %163 = vmatpush1.msra.mxu0 %v36
  %164 = vmatprep.subr.mxu0 0.0
  %165 = vmatpush2.msra.mxu0 0.0
  %166 = vmatprep.subr.mxu0 0.0
  %167 = vmatpush2.msra.mxu0 0.0
  %168 = vmatprep.subr.mxu0 0.0
  %169 = vmatpush2.msra.mxu0 0.0
  %170 = vmatprep.subr.mxu0 0.0
  %171 = vmatpush2.msra.mxu0 0.0
  %172 = vmatprep.subr.mxu0 0.0
  %173 = vmatpush2.msra.mxu0 0.0
  %174 = vmatprep.subr.mxu0 0.0
  %175 = vmatpush2.msra.mxu0 0.0
  %176 = vmatprep.subr.mxu0 0.0
  %177 = vmatpush2.msra.mxu0 0.0
  %178 = vmatprep.subr.mxu0 0.0
  %179 = vmatpush2.msra.mxu0 0.0
  %180 = vmatprep.subr.mxu0 0.0
  %181 = vmatpush2.msra.mxu0 0.0
  %182 = vmatprep.subr.mxu0 0.0
  %183 = vmatpush2.msra.mxu0 0.0
  %184 = vmatprep.subr.mxu0 0.0
  %185 = vmatpush2.msra.mxu0 0.0
  %186 = vmatprep.subr.mxu0 0.0
  %187 = vmatpush2.msra.mxu0 0.0
  %188 = vmatprep.subr.mxu0 0.0
  %189 = vmatpush2.msra.mxu0 0.0
  %190 = vmatprep.subr.mxu0 0.0
  %191 = vmatpush2.msra.mxu0 0.0
  %192 = vmatprep.subr.mxu0 0.0
  %193 = vmatpush2.msra.mxu0 0.0
  %194 = vmatprep.subr.mxu0 0.0
  %195 = vmatpush2.msra.mxu0 0.0
  %196 = vmatprep.mubr.f32.mxu0 0.0
  %197 = vmatmul.mubr.f32.gmra.mxu0 %v59
  %v198 = vpop.f32.mrf.mxu0
  %v199 = vadd.f32 %v55, %v198
  %v200 = vpop.f32.mrf.mxu0
  %v201 = vadd.f32 %v55, %v200
  %202 = vdwg.mxu0
  %v203 = vxor.u32 %v128, 2147483648
  %v204 = vxor.u32 %v130, 2147483648
  %v205 = vxor.u32 %v199, 2147483648
  %v206 = vxor.u32 %v201, 2147483648
  %v207 = vmul.f32 %v203, 1.442695
  %v208 = vpow.pop %v207
  %v209 = vmul.f32 %v204, 1.442695
  %v210 = vpow.pop %v209
  %v211 = vmul.f32 %v205, 1.442695
  %v212 = vpow.pop %v211
  %v213 = vmul.f32 %v206, 1.442695
  %v214 = vpow.pop %v213
  %v215 = vadd.f32 %v208, 1.0
  %v216 = vadd.f32 %v210, 1.0
  %v217 = vadd.f32 %v212, 1.0
  %v218 = vadd.f32 %v214, 1.0
  %v219 = vrcp.pop %v215
  %v220 = vmul.f32 1.0, %v219
  %v221 = vrcp.pop %v216
  %v222 = vmul.f32 1.0, %v221
  %v223 = vrcp.pop %v217
  %v224 = vmul.f32 1.0, %v223
  %v225 = vrcp.pop %v218
  %v226 = vmul.f32 1.0, %v225
  %v227 = vmul.f32 %v128, %v220
  %v228 = vmul.f32 %v130, %v222
  %v229 = vmul.f32 %v199, %v224
  %v230 = vmul.f32 %v201, %v226
  %v231 = vld [vmem:[%s3] sm:$0xff]
  %233 = vset.pattern.permute.xlu0 0
  %234 = vperm.xlu0 %233, %v231
  %v235 = vpop.permute.xlu0 %234
  %v237 = vmul.f32 %v227, %v235
  %v238 = vmul.f32 %v228, %v235
  %v239 = vmul.f32 %v229, %v235
  %v240 = vmul.f32 %v230, %v235
  %v241 = vrot.slane %v237, 4
  %v242 = vadd.f32 %v237, %v241
  %v243 = vrot.slane %v242, 2
  %v244 = vadd.f32 %v242, %v243
  %v245 = vrot.slane %v244, 1
  %v246 = vadd.f32 %v244, %v245
  %v247 = vrot.slane %v238, 4
  %v248 = vadd.f32 %v238, %v247
  %v249 = vrot.slane %v248, 2
  %v250 = vadd.f32 %v248, %v249
  %v251 = vrot.slane %v250, 1
  %v252 = vadd.f32 %v250, %v251
  %v253 = vrot.slane %v239, 4
  %v254 = vadd.f32 %v239, %v253
  %v255 = vrot.slane %v254, 2
  %v256 = vadd.f32 %v254, %v255
  %v257 = vrot.slane %v256, 1
  %v258 = vadd.f32 %v256, %v257
  %v259 = vrot.slane %v240, 4
  %v260 = vadd.f32 %v240, %v259
  %v261 = vrot.slane %v260, 2
  %v262 = vadd.f32 %v260, %v261
  %v263 = vrot.slane %v262, 1
  %v264 = vadd.f32 %v262, %v263
  %v265 = vld [vmem:[#allocation2] sm:$0x1]
  %267 = vset.pattern.permute.xlu0 0
  %268 = vperm.xlu0 %267, %v265
  %v269 = vpop.permute.xlu0 %268
  %v271 = vlaneseq
  %v272 = vshrl.u32 %v271, 7
  %v273 = vsub.s32 0, %v272
  %v274 = vrot.slane %v269, %v273
  %v275 = vadd.f32 %v246, %v274
  %v276 = vadd.f32 %v252, %v274
  %v277 = vadd.f32 %v258, %v274
  %v278 = vadd.f32 %v264, %v274
  %v279 = vxor.u32 %v275, 2147483648
  %v280 = vxor.u32 %v276, 2147483648
  %v281 = vxor.u32 %v277, 2147483648
  %v282 = vxor.u32 %v278, 2147483648
  %v283 = vmul.f32 %v279, 1.442695
  %v284 = vpow.pop %v283
  %v285 = vmul.f32 %v280, 1.442695
  %v286 = vpow.pop %v285
  %v287 = vmul.f32 %v281, 1.442695
  %v288 = vpow.pop %v287
  %v289 = vmul.f32 %v282, 1.442695
  %v290 = vpow.pop %v289
  %v291 = vadd.f32 %v284, 1.0
  %v292 = vadd.f32 %v286, 1.0
  %v293 = vadd.f32 %v288, 1.0
  %v294 = vadd.f32 %v290, 1.0
  %v295 = vrcp.pop %v291
  %v296 = vmul.f32 1.0, %v295
  %v297 = vrcp.pop %v292
  %v298 = vmul.f32 1.0, %v297
  %v299 = vrcp.pop %v293
  %v300 = vmul.f32 1.0, %v299
  %v301 = vrcp.pop %v294
  %v302 = vmul.f32 1.0, %v301
  %v303 = vmul.f32 %v34, %v296
  %v304 = vmul.f32 %v35, %v298
  %v305 = vmul.f32 %v36, %v300
  %v306 = vmul.f32 %v37, %v302
  %v307 = vmul.f32 %v38, %v296
  %v308 = vmul.f32 %v39, %v298
  %v309 = vmul.f32 %v40, %v300
  %v310 = vmul.f32 %v41, %v302
  %v311 = vmul.f32 %v42, %v296
  %v312 = vmul.f32 %v43, %v298
  %v313 = vmul.f32 %v44, %v300
  %v314 = vmul.f32 %v45, %v302
  %v315 = vmul.f32 %v46, %v296
  %v316 = vmul.f32 %v47, %v298
  %v317 = vmul.f32 %v48, %v300
  %v318 = vmul.f32 %v49, %v302
  %v319 = vadd.f32 %v303, %v304
  %320 = vadd.xlane.f32.xlu0 %v319
  %v321 = vpop.xlane.xlu0 %320
  %v322 = vadd.f32 %v307, %v308
  %323 = vadd.xlane.f32.xlu0 %v322
  %v324 = vpop.xlane.xlu0 %323
  %v325 = vadd.f32 %v311, %v312
  %326 = vadd.xlane.f32.xlu0 %v325
  %v327 = vpop.xlane.xlu0 %326
  %v328 = vadd.f32 %v315, %v316
  %329 = vadd.xlane.f32.xlu0 %v328
  %v330 = vpop.xlane.xlu0 %329
  %v331 = vmax.f32 %v303, %v304
  %332 = vmax.xlane.f32.xlu0 %v331
  %v333 = vpop.xlane.xlu0 %332
  %v334 = vmax.f32 %v307, %v308
  %335 = vmax.xlane.f32.xlu0 %v334
  %v336 = vpop.xlane.xlu0 %335
  %v337 = vmax.f32 %v311, %v312
  %338 = vmax.xlane.f32.xlu0 %v337
  %v339 = vpop.xlane.xlu0 %338
  %v340 = vmax.f32 %v315, %v316
  %341 = vmax.xlane.f32.xlu0 %v340
  %v342 = vpop.xlane.xlu0 %341
  %v343 = vadd.f32 %v305, %v306
  %344 = vadd.xlane.f32.xlu0 %v343
  %v345 = vpop.xlane.xlu0 %344
  %v346 = vadd.f32 %v309, %v310
  %347 = vadd.xlane.f32.xlu0 %v346
  %v348 = vpop.xlane.xlu0 %347
  %v349 = vadd.f32 %v313, %v314
  %350 = vadd.xlane.f32.xlu0 %v349
  %v351 = vpop.xlane.xlu0 %350
  %v352 = vadd.f32 %v317, %v318
  %353 = vadd.xlane.f32.xlu0 %v352
  %v354 = vpop.xlane.xlu0 %353
  %v355 = vmax.f32 %v305, %v306
  %356 = vmax.xlane.f32.xlu0 %v355
  %v357 = vpop.xlane.xlu0 %356
  %v358 = vmax.f32 %v309, %v310
  %359 = vmax.xlane.f32.xlu0 %v358
  %v360 = vpop.xlane.xlu0 %359
  %v361 = vmax.f32 %v313, %v314
  %362 = vmax.xlane.f32.xlu0 %v361
  %v363 = vpop.xlane.xlu0 %362
  %v364 = vmax.f32 %v317, %v318
  %365 = vmax.xlane.f32.xlu0 %v364
  %v366 = vpop.xlane.xlu0 %365
  %vm367 = vcmask 7168
  %v368 = vsel %vm367, %v321, %v345
  %v369 = vsel %vm367, %v324, %v348
  %v370 = vsel %vm367, %v327, %v351
  %v371 = vsel %vm367, %v330, %v354
  %v372 = vsel %vm367, %v333, %v357
  %v373 = vsel %vm367, %v336, %v360
  %v374 = vsel %vm367, %v339, %v363
  %v375 = vsel %vm367, %v342, %v366
  %v376 = vld [vmem:[%s5] sm:$0xff]
  %v377 = vld [vmem:[%s5 + $0x8] sm:$0xff]
  %v378 = vld [vmem:[%s6] sm:$0xff]
  %v379 = vld [vmem:[%s6 + $0x8] sm:$0xff]
  %381 = vset.pattern.permute.xlu0 0
  %382 = vperm.xlu0 %381, %v378
  %v383 = vpop.permute.xlu0 %382
  %386 = vset.pattern.permute.xlu0 0
  %387 = vperm.xlu0 %386, %v379
  %v388 = vpop.permute.xlu0 %387
  %vm390 = vcmask 523264
  %v392 = vsel %vm390, %v376, 0
  %v395 = vsel %vm390, %v377, 0
  %397 = vmatprep.subr.mxu0 0.0
  %398 = vmatpush1.msra.mxu0 0.0
  %399 = vmatprep.subr.mxu0 0.0
  %400 = vmatpush1.msra.mxu0 0.0
  %401 = vmatprep.subr.mxu0 0.0
  %402 = vmatpush1.msra.mxu0 0.0
  %403 = vmatprep.subr.mxu0 0.0
  %404 = vmatpush1.msra.mxu0 0.0
  %405 = vmatprep.subr.mxu0 0.0
  %406 = vmatpush1.msra.mxu0 0.0
  %407 = vmatprep.subr.mxu0 0.0
  %408 = vmatpush1.msra.mxu0 0.0
  %409 = vmatprep.subr.mxu0 0.0
  %410 = vmatpush1.msra.mxu0 0.0
  %411 = vmatprep.subr.mxu0 0.0
  %412 = vmatpush1.msra.mxu0 0.0
  %413 = vmatprep.subr.mxu0 0.0
  %414 = vmatpush1.msra.mxu0 %v375
  %415 = vmatprep.subr.mxu0 0.0
  %416 = vmatpush1.msra.mxu0 %v374
  %417 = vmatprep.subr.mxu0 0.0
  %418 = vmatpush1.msra.mxu0 %v373
  %419 = vmatprep.subr.mxu0 0.0
  %420 = vmatpush1.msra.mxu0 %v372
  %421 = vmatprep.subr.mxu0 0.0
  %422 = vmatpush1.msra.mxu0 %v371
  %423 = vmatprep.subr.mxu0 0.0
  %424 = vmatpush1.msra.mxu0 %v370
  %425 = vmatprep.subr.mxu0 0.0
  %426 = vmatpush1.msra.mxu0 %v369
  %427 = vmatprep.subr.mxu0 0.0
  %428 = vmatpush1.msra.mxu0 %v368
  %429 = vmatprep.subr.mxu0 0.0
  %430 = vmatpush2.msra.mxu0 0.0
  %431 = vmatprep.subr.mxu0 0.0
  %432 = vmatpush2.msra.mxu0 0.0
  %433 = vmatprep.subr.mxu0 0.0
  %434 = vmatpush2.msra.mxu0 0.0
  %435 = vmatprep.subr.mxu0 0.0
  %436 = vmatpush2.msra.mxu0 0.0
  %437 = vmatprep.subr.mxu0 0.0
  %438 = vmatpush2.msra.mxu0 0.0
  %439 = vmatprep.subr.mxu0 0.0
  %440 = vmatpush2.msra.mxu0 0.0
  %441 = vmatprep.subr.mxu0 0.0
  %442 = vmatpush2.msra.mxu0 0.0
  %443 = vmatprep.subr.mxu0 0.0
  %444 = vmatpush2.msra.mxu0 0.0
  %445 = vmatprep.subr.mxu0 0.0
  %446 = vmatpush2.msra.mxu0 0.0
  %447 = vmatprep.subr.mxu0 0.0
  %448 = vmatpush2.msra.mxu0 0.0
  %449 = vmatprep.subr.mxu0 0.0
  %450 = vmatpush2.msra.mxu0 0.0
  %451 = vmatprep.subr.mxu0 0.0
  %452 = vmatpush2.msra.mxu0 0.0
  %453 = vmatprep.subr.mxu0 0.0
  %454 = vmatpush2.msra.mxu0 0.0
  %455 = vmatprep.subr.mxu0 0.0
  %456 = vmatpush2.msra.mxu0 0.0
  %457 = vmatprep.subr.mxu0 0.0
  %458 = vmatpush2.msra.mxu0 0.0
  %459 = vmatprep.subr.mxu0 0.0
  %460 = vmatpush2.msra.mxu0 0.0
  %461 = vmatprep.mubr.f32.mxu0 0.0
  %462 = vmatmul.mubr.f32.gmra.mxu0 %v392
  %v463 = vpop.f32.mrf.mxu0
  %v464 = vadd.f32 %v383, %v463
  %v465 = vpop.f32.mrf.mxu0
  %466 = vmatprep.mubr.f32.mxu0 0.0
  %467 = vmatmul.mubr.f32.gmra.mxu0 %v395
  %v468 = vpop.f32.mrf.mxu0
  %v469 = vadd.f32 %v388, %v468
  %v470 = vpop.f32.mrf.mxu0
  %471 = vdwg.mxu0
  %v472 = vxor.u32 %v464, 2147483648
  %v473 = vxor.u32 %v469, 2147483648
  %v474 = vmul.f32 %v472, 1.442695
  %v475 = vpow.pop %v474
  %v476 = vmul.f32 %v473, 1.442695
  %v477 = vpow.pop %v476
  %v478 = vadd.f32 %v475, 1.0
  %v479 = vadd.f32 %v477, 1.0
  %v480 = vrcp.pop %v478
  %v481 = vmul.f32 1.0, %v480
  %v482 = vrcp.pop %v479
  %v483 = vmul.f32 1.0, %v482
  %v484 = vmul.f32 %v464, %v481
  %v485 = vmul.f32 %v469, %v483
  %v486 = vld [vmem:[%s7] sm:$0xf]
  %v487 = vld [vmem:[%s8] sm:$0xf]
  %489 = vset.pattern.permute.xlu0 0
  %490 = vperm.xlu0 %489, %v487
  %v491 = vpop.permute.xlu0 %490
  %vm493 = vcmask 130048
  %v495 = vsel %vm493, %v486, 0
  %497 = vmatprep.subr.mxu0 0.0
  %498 = vmatpush1.msra.mxu0 0.0
  %499 = vmatprep.subr.mxu0 0.0
  %500 = vmatpush1.msra.mxu0 0.0
  %501 = vmatprep.subr.mxu0 0.0
  %502 = vmatpush1.msra.mxu0 0.0
  %503 = vmatprep.subr.mxu0 0.0
  %504 = vmatpush1.msra.mxu0 0.0
  %505 = vmatprep.subr.mxu0 0.0
  %506 = vmatpush1.msra.mxu0 0.0
  %507 = vmatprep.subr.mxu0 0.0
  %508 = vmatpush1.msra.mxu0 0.0
  %509 = vmatprep.subr.mxu0 0.0
  %510 = vmatpush1.msra.mxu0 0.0
  %511 = vmatprep.subr.mxu0 0.0
  %512 = vmatpush1.msra.mxu0 0.0
  %513 = vmatprep.subr.mxu0 0.0
  %514 = vmatpush1.msra.mxu0 0.0
  %515 = vmatprep.subr.mxu0 0.0
  %516 = vmatpush1.msra.mxu0 0.0
  %517 = vmatprep.subr.mxu0 0.0
  %518 = vmatpush1.msra.mxu0 0.0
  %519 = vmatprep.subr.mxu0 0.0
  %520 = vmatpush1.msra.mxu0 0.0
  %521 = vmatprep.subr.mxu0 0.0
  %522 = vmatpush1.msra.mxu0 0.0
  %523 = vmatprep.subr.mxu0 0.0
  %524 = vmatpush1.msra.mxu0 0.0
  %525 = vmatprep.subr.mxu0 0.0
  %526 = vmatpush1.msra.mxu0 %v485
  %527 = vmatprep.subr.mxu0 0.0
  %528 = vmatpush1.msra.mxu0 %v484
  %529 = vmatprep.subr.mxu0 0.0
  %530 = vmatpush2.msra.mxu0 0.0
  %531 = vmatprep.subr.mxu0 0.0
  %532 = vmatpush2.msra.mxu0 0.0
  %533 = vmatprep.subr.mxu0 0.0
  %534 = vmatpush2.msra.mxu0 0.0
  %535 = vmatprep.subr.mxu0 0.0
  %536 = vmatpush2.msra.mxu0 0.0
  %537 = vmatprep.subr.mxu0 0.0
  %538 = vmatpush2.msra.mxu0 0.0
  %539 = vmatprep.subr.mxu0 0.0
  %540 = vmatpush2.msra.mxu0 0.0
  %541 = vmatprep.subr.mxu0 0.0
  %542 = vmatpush2.msra.mxu0 0.0
  %543 = vmatprep.subr.mxu0 0.0
  %544 = vmatpush2.msra.mxu0 0.0
  %545 = vmatprep.subr.mxu0 0.0
  %546 = vmatpush2.msra.mxu0 0.0
  %547 = vmatprep.subr.mxu0 0.0
  %548 = vmatpush2.msra.mxu0 0.0
  %549 = vmatprep.subr.mxu0 0.0
  %550 = vmatpush2.msra.mxu0 0.0
  %551 = vmatprep.subr.mxu0 0.0
  %552 = vmatpush2.msra.mxu0 0.0
  %553 = vmatprep.subr.mxu0 0.0
  %554 = vmatpush2.msra.mxu0 0.0
  %555 = vmatprep.subr.mxu0 0.0
  %556 = vmatpush2.msra.mxu0 0.0
  %557 = vmatprep.subr.mxu0 0.0
  %558 = vmatpush2.msra.mxu0 0.0
  %559 = vmatprep.subr.mxu0 0.0
  %560 = vmatpush2.msra.mxu0 0.0
  %561 = vmatprep.mubr.f32.mxu0 0.0
  %562 = vmatmul.mubr.f32.gmra.mxu0 %v495
  %v563 = vpop.f32.mrf.mxu0
  %v564 = vadd.f32 %v491, %v563
  %v565 = vpop.f32.mrf.mxu0
  %566 = vdwg.mxu0
  %vm567 = vcmask 11264
  %v568 = vsel %vm567, %v564, -inf
  %v569 = vrot.slane %v568, 4
  %v570 = vmax.f32 %v568, %v569
  %v571 = vrot.slane %v570, 2
  %v572 = vmax.f32 %v570, %v571
  %v573 = vrot.slane %v572, 1
  %v574 = vmax.f32 %v572, %v573
  %v575 = vsub.f32 %v564, %v574
  %v576 = vmul.f32 %v575, 1.442695
  %v577 = vpow.pop %v576
  %v578 = vsel %vm567, %v577, 0.0
  %v579 = vrot.slane %v578, 4
  %v580 = vadd.f32 %v578, %v579
  %v581 = vrot.slane %v580, 2
  %v582 = vadd.f32 %v580, %v581
  %v583 = vrot.slane %v582, 1
  %v584 = vadd.f32 %v582, %v583
  %v585 = vrcp.pop %v584
  %v586 = vmul.f32 %v577, %v585
  %587 = vst.msk [vmem:[%s9] sm:$0xf] %vm567, %v586
  // Predicated region
  $region38: #{_gate_forward_impl.1} parent=0 // pred_check
    _
  $region39: #{_gate_forward_impl.1} parent=0 // pred_check_branch
    %589 = sbr.rel (0) target = $region41
  $region40: #{_gate_forward_impl.1} parent=0 // pred_region
    _
  $region41: #{_gate_forward_impl.1} parent=0 // pred_fallthru
    _
  // Predicated region
  $region42: #{_gate_forward_impl.1} parent=0 // pred_check
    _
  $region43: #{_gate_forward_impl.1} parent=0 // pred_check_branch
    %591 = sbr.rel (0) target = $region45
  $region44: #{_gate_forward_impl.1} parent=0 // pred_region
    _
  $region45: #{_gate_forward_impl.1} parent=0 // pred_fallthru
    _

</llo_original>
